<compile_context>
chip_gen: v5e
topology: v5e:2x2
jax: 0.10.0
libtpu: 0.0.40
codegen_flags: <defaults>
</compile_context>

<pallas_src>
import jax
import jax.numpy as jnp
from jax.experimental import pallas as pl
from jax.experimental.pallas import tpu as pltpu

_LANE = 128
_SUBLANE = {4: 8, 2: 16, 1: 32}  # sublane quantum per itemsize


def _round_up(n, m):
    return (n + m - 1) // m * m


def _pick_th(h, per_row_bytes, sub, budget):
    """Largest TH dividing h with TH % sub == 0, TH*per_row_bytes <= budget.
    Falls back to the full extent (always layout-legal)."""
    if h * per_row_bytes <= budget:
        return h
    best = None
    t = sub
    while t < h:
        if h % t == 0 and t * per_row_bytes <= budget:
            best = t
        t += sub
    return best if best is not None else h


def _pick_tc(c, w, per_chan_bytes, budget):
    """Largest TC dividing c with (TC*w) % 128 == 0 (lane-dense output block)
    and TC*per_chan_bytes <= budget.  Falls back to the full extent."""
    if c * per_chan_bytes <= budget:
        return c
    best = None
    for t in range(1, c):
        if c % t == 0 and (t * w) % _LANE == 0 and t * per_chan_bytes <= budget:
            best = t
    return best if best is not None else c


def _swap_kernel(x_ref, o_ref):
    # x_ref: (TC, TH, W)   slab of one batch element
    # o_ref: (TH, TC*W)    lane-dense output slab (channels flattened to lanes)
    tc, _, w = x_ref.shape
    for c in range(tc):  # static unroll; TC is kept modest by the tile picker
        o_ref[:, c * w:(c + 1) * w] = x_ref[c]


def swap_layer(x: jax.Array, *, tc: int | None = None, th: int | None = None) -> jax.Array:
    """Pallas equivalent of torch.Tensor.transpose(1, 2) for rank >= 3 input."""
    if x.ndim < 3:
        raise ValueError("swap_layer expects rank >= 3 input")
    B, C, H = x.shape[:3]
    rest = x.shape[3:]
    W = 1
    for d in rest:
        W *= d
    x4 = x.reshape(B, C, H, W)  # free: collapses trailing contiguous dims

    itemsize = jnp.dtype(x.dtype).itemsize
    sub = _SUBLANE.get(itemsize, 8)
    w_pad = _round_up(W, _LANE)

    # Tile sizes: H first (bounded per-channel bytes), then C (bounded tile pair).
    if th is None:
        th = _pick_th(H, w_pad * itemsize, sub, budget=512 * 1024)
    if tc is None:
        per_chan = (th * w_pad + th * W) * itemsize  # in + out bytes per channel
        tc = _pick_tc(C, W, per_chan, budget=2 * 1024 * 1024)
    assert H % th == 0 and C % tc == 0, (tc, th)

    # Explicit VMEM budget (double-buffered in + out, lane/sublane padded).
    in_block = tc * _round_up(th, sub) * w_pad * itemsize
    out_block = _round_up(th, sub) * _round_up(tc * W, _LANE) * itemsize
    need = 2 * (in_block + out_block)
    vmem_limit = int(min(max(2 * need, 8 * 1024 * 1024), 64 * 1024 * 1024))

    grid = (B, C // tc, H // th)

    out3 = pl.pallas_call(
        _swap_kernel,
        out_shape=jax.ShapeDtypeStruct((B, H, C * W), x.dtype),
        grid_spec=pltpu.PrefetchScalarGridSpec(
            num_scalar_prefetch=0,
            grid=grid,
            in_specs=[
                pl.BlockSpec(
                    (pl.Squeezed(), tc, th, W),
                    lambda b, ci, hi: (b, ci, hi, 0),
                )
            ],
            out_specs=pl.BlockSpec(
                (pl.Squeezed(), th, tc * W),
                lambda b, ci, hi: (b, hi, ci),
            ),
        ),
        compiler_params=pltpu.CompilerParams(
            dimension_semantics=("parallel", "parallel", "parallel"),
            vmem_limit_bytes=vmem_limit,
        ),
    )(x4)

    # Free contiguous reshape back: (B, H, C*W) -> (B, H, C, *rest).
    return out3.reshape((B, H, C) + rest)


if __name__ == "__main__":
    key = jax.random.PRNGKey(0)

    # Shape implied by the module's NCHW-style usage.
    x = jax.random.normal(key, (2, 4, 16, 16), dtype=jnp.float32)
    out = jax.block_until_ready(swap_layer(x))
    ref = jnp.transpose(x, (0, 2, 1, 3))
    assert out.shape == (2, 16, 4, 16), out.shape
    assert jnp.array_equal(out, ref), "mismatch vs reference transpose"

    # Exercise the tiled / multi-block path (grid = (2, 2, 2), lane-dense 128-wide
    # output blocks) with explicit small tiles.
    key2 = jax.random.PRNGKey(1)
    x2 = jax.random.normal(key2, (2, 16, 32, 16), dtype=jnp.float32)
    out2 = jax.block_until_ready(swap_layer(x2, tc=8, th=16))
    ref2 = jnp.transpose(x2, (0, 2, 1, 3))
    assert jnp.array_equal(out2, ref2), "mismatch vs reference transpose (tiled)"

    print("KERNEL_OK")
</pallas_src>

<mosaic_0001>
module attributes {stable_mosaic.version = 11 : i64} {
  func.func @_swap_kernel(%arg0: i32, %arg1: i32, %arg2: i32, %arg3: memref<1x4x16x16xf32, #tpu.memory_space<vmem>>, %arg4: memref<1x16x64xf32, #tpu.memory_space<vmem>>) attributes {dimension_semantics = [#tpu.dimension_semantics<parallel>, #tpu.dimension_semantics<parallel>, #tpu.dimension_semantics<parallel>], iteration_bounds = array<i64: 2, 1, 1>, scalar_prefetch = 0 : i64, scratch_operands = 0 : i64, tpu.core_type = #tpu.core_type<tc>, window_params = [{transform_indices = @transform_0, window_bounds = array<i64: 1, 4, 16, 16>}, {transform_indices = @transform_1, window_bounds = array<i64: 1, 16, 64>}]} {
    %c0 = arith.constant 0 : index
    %c0_0 = arith.constant 0 : index
    %c0_1 = arith.constant 0 : index
    %c0_2 = arith.constant 0 : index
    %0 = vector.load %arg3[%c0, %c0_0, %c0_1, %c0_2] : memref<1x4x16x16xf32, #tpu.memory_space<vmem>>, vector<1x1x16x16xf32>
    %1 = vector.shape_cast %0 : vector<1x1x16x16xf32> to vector<16x16xf32>
    %c0_3 = arith.constant 0 : index
    %c0_4 = arith.constant 0 : index
    %c0_5 = arith.constant 0 : index
    %2 = vector.load %arg4[%c0_3, %c0_4, %c0_5] : memref<1x16x64xf32, #tpu.memory_space<vmem>>, vector<1x16x16xf32>
    %3 = vector.shape_cast %2 : vector<1x16x16xf32> to vector<16x16xf32>
    %4 = vector.shape_cast %1 : vector<16x16xf32> to vector<1x16x16xf32>
    tpu.vector_store %arg4[%c0_3, %c0_4, %c0_5], %4 {strides = array<i32>} : memref<1x16x64xf32, #tpu.memory_space<vmem>>, vector<1x16x16xf32>,
    %c0_6 = arith.constant 0 : index
    %c1 = arith.constant 1 : index
    %c0_7 = arith.constant 0 : index
    %c0_8 = arith.constant 0 : index
    %5 = vector.load %arg3[%c0_6, %c1, %c0_7, %c0_8] : memref<1x4x16x16xf32, #tpu.memory_space<vmem>>, vector<1x1x16x16xf32>
    %6 = vector.shape_cast %5 : vector<1x1x16x16xf32> to vector<16x16xf32>
    %c0_9 = arith.constant 0 : index
    %c0_10 = arith.constant 0 : index
    %c16 = arith.constant 16 : index
    %7 = vector.load %arg4[%c0_9, %c0_10, %c16] : memref<1x16x64xf32, #tpu.memory_space<vmem>>, vector<1x16x16xf32>
    %8 = vector.shape_cast %7 : vector<1x16x16xf32> to vector<16x16xf32>
    %9 = vector.shape_cast %6 : vector<16x16xf32> to vector<1x16x16xf32>
    tpu.vector_store %arg4[%c0_9, %c0_10, %c16], %9 {strides = array<i32>} : memref<1x16x64xf32, #tpu.memory_space<vmem>>, vector<1x16x16xf32>,
    %c0_11 = arith.constant 0 : index
    %c2 = arith.constant 2 : index
    %c0_12 = arith.constant 0 : index
    %c0_13 = arith.constant 0 : index
    %10 = vector.load %arg3[%c0_11, %c2, %c0_12, %c0_13] : memref<1x4x16x16xf32, #tpu.memory_space<vmem>>, vector<1x1x16x16xf32>
    %11 = vector.shape_cast %10 : vector<1x1x16x16xf32> to vector<16x16xf32>
    %c0_14 = arith.constant 0 : index
    %c0_15 = arith.constant 0 : index
    %c32 = arith.constant 32 : index
    %12 = vector.load %arg4[%c0_14, %c0_15, %c32] : memref<1x16x64xf32, #tpu.memory_space<vmem>>, vector<1x16x16xf32>
    %13 = vector.shape_cast %12 : vector<1x16x16xf32> to vector<16x16xf32>
    %14 = vector.shape_cast %11 : vector<16x16xf32> to vector<1x16x16xf32>
    tpu.vector_store %arg4[%c0_14, %c0_15, %c32], %14 {strides = array<i32>} : memref<1x16x64xf32, #tpu.memory_space<vmem>>, vector<1x16x16xf32>,
    %c0_16 = arith.constant 0 : index
    %c3 = arith.constant 3 : index
    %c0_17 = arith.constant 0 : index
    %c0_18 = arith.constant 0 : index
    %15 = vector.load %arg3[%c0_16, %c3, %c0_17, %c0_18] : memref<1x4x16x16xf32, #tpu.memory_space<vmem>>, vector<1x1x16x16xf32>
    %16 = vector.shape_cast %15 : vector<1x1x16x16xf32> to vector<16x16xf32>
    %c0_19 = arith.constant 0 : index
    %c0_20 = arith.constant 0 : index
    %c48 = arith.constant 48 : index
    %17 = vector.load %arg4[%c0_19, %c0_20, %c48] : memref<1x16x64xf32, #tpu.memory_space<vmem>>, vector<1x16x16xf32>
    %18 = vector.shape_cast %17 : vector<1x16x16xf32> to vector<16x16xf32>
    %19 = vector.shape_cast %16 : vector<16x16xf32> to vector<1x16x16xf32>
    tpu.vector_store %arg4[%c0_19, %c0_20, %c48], %19 {strides = array<i32>} : memref<1x16x64xf32, #tpu.memory_space<vmem>>, vector<1x16x16xf32>,
    return
  }
  func.func @transform_0(%arg0: i32, %arg1: i32, %arg2: i32) -> (i32, i32, i32, i32) {
    %c0_i32 = arith.constant 0 : i32
    %c0_i32_0 = arith.constant 0 : i32
    return %arg0, %arg1, %arg2, %c0_i32 : i32, i32, i32, i32
  }
  func.func @transform_1(%arg0: i32, %arg1: i32, %arg2: i32) -> (i32, i32, i32) {
    %c0_i32 = arith.constant 0 : i32
    return %arg0, %arg2, %arg1 : i32, i32, i32
  }
}

</mosaic_0001>

<llo_original>
// kernel: tpu_custom_call.1
$region0: #{tpu_custom_call.1}
  #allocation0 [shape = 'u32[]', space=smem, size = 0x4, offset = 0x4, fixed_abs, tag = 'smem constant byte address 0x4 - core index']
  #allocation1 [shape = 'u32[72,128]{1,0:T(1,128)}', space=vmem, size = 0x9000, scoped, tag = 'internal scratch']
  %s0 = inlined_call_operand.hbm [shape: f32[2,4,16,16], index: 0, kind: input, shape index: {}]
  %s1 = inlined_call_operand.hbm [shape: f32[2,16,64], index: 1, kind: output, shape index: {}]
  %s2 = sld [smem:[#allocation0]]
  $region41: #{tpu_custom_call.1} parent=0
    _
  %s4 = ssub.s32 1, %s2
  %s5 = scalar_select 0, %s4, %s2
  $region1: #{tpu_custom_call.1} parent=0
    #allocation2 [shape = 'u8[65536]{0}', space=vmem, size = 0x10000, scoped, tag = 'input window, operand 0']
    #allocation3 [shape = 's32[2]{0}', space=sflag, size = 0x8, scoped, tag = 'scoped memory for tpu_custom_call.1']
    #allocation4 [shape = 's32[2]{0}', space=sflag, size = 0x8, scoped, tag = 'scoped memory for tpu_custom_call.1']
    #allocation5 [shape = 'u8[16384]{0}', space=vmem, size = 0x4000, scoped, tag = 'output window, operand 0']
    %6 = vsyncpa [#allocation3], 0
    %s7 = scalar_lea.sflag [#allocation3], 1
    %8 = vsyncpa %s7, 0
    %9 = vsyncpa [#allocation4], 0
    %s10 = scalar_lea.sflag [#allocation4], 1
    %11 = vsyncpa %s10, 0
    loop: start=0, step=1, limit=4
    $region2: #{tpu_custom_call.1} parent=1 // loop_pre_header
      _
    $region3: #{tpu_custom_call.1} parent=1 // loop_header
      %s13 = sphi 0, %s17
      %p14 = scmp.ge.s32.totalorder %s13, 4
      %s20 = sphi 0, %s39
      %s21 = sphi 0, %s35
      %s22 = sphi 0, %s31
      %s23 = sphi 0, %s20
      %s24 = sphi 0, %s21
      %s25 = sphi 0, %s22
      %s26 = sphi 0, %s23
      %s27 = sphi 0, %s24
      %s28 = sphi 0, %s25
      %s46 = sphi 0, %s48
      %s49 = sphi 0, %s46
      %s50 = sphi 0, %s49
      %s66 = sphi 0, %s50
      %s76 = sphi 0, %s78
      %s79 = sphi 0, %s76
      %s80 = sphi 0, %s79
      %s96 = sphi 0, %s80
    $region4: #{tpu_custom_call.1} parent=1 // loop_header_branch
      %16 = sbr.rel (%p14) target = $region8
    $region5: #{tpu_custom_call.1} parent=1 // loop_body
      %s18 = ssub.s32 %s13, 1
      %s19 = ssub.s32 %s13, 2
      %s29 = sadd.s32 1, %s22
      %p30 = scmp.ge.s32.totalorder %s29, 1
      %s31 = scalar_select %p30, 0, %s29
      %s32 = sadd.s32 1, %s21
      %s33 = scalar_select %p30, %s32, %s21
      %p34 = scmp.ge.s32.totalorder %s33, 1
      %s35 = scalar_select %p34, 0, %s33
      %s36 = sadd.s32 1, %s20
      %s37 = scalar_select %p34, %s36, %s20
      %p38 = scmp.ge.s32.totalorder %s37, 2
      %s39 = scalar_select %p38, 0, %s37
      %s40 = ssub.s32 %s20, %s39
      %s41 = ssub.s32 %s21, %s35
      %s42 = sor.u32 %s40, %s41
      %s43 = ssub.s32 %s22, %s31
      %s44 = sor.u32 %s42, %s43
      %p45 = scmp.eq.s32.totalorder %s44, 0
      %s47 = sadd.s32 %s46, 1
      %s48 = scalar_select %p45, %s46, %s47
      %p51 = pneg %p45
      %p52 = scmp.eq.s32.totalorder %s13, 1
      %p53 = por %p51, %p52
      %p54 = scmp.ne.s32.totalorder %s46, %s49
      %p55 = scmp.eq.s32.totalorder %s13, 0
      %p56 = por %p54, %p55
      %p57 = scmp.ne.s32.totalorder %s46, %s49
      %p58 = scmp.eq.s32.totalorder %s18, 1
      %p59 = por %p57, %p58
      %p60 = scmp.ne.s32.totalorder %s49, %s50
      %p61 = scmp.eq.s32.totalorder %s18, 0
      %p62 = por %p60, %p61
      %p63 = scmp.ne.s32.totalorder %s49, %s50
      %p64 = scmp.eq.s32.totalorder %s19, 1
      %p65 = por %p63, %p64
      %p67 = scmp.ne.s32.totalorder %s50, %s66
      %p68 = scmp.eq.s32.totalorder %s19, 0
      %p69 = por %p67, %p68
      %s70 = ssub.s32 %s20, %s39
      %s71 = ssub.s32 %s22, %s31
      %s72 = sor.u32 %s70, %s71
      %s73 = ssub.s32 %s21, %s35
      %s74 = sor.u32 %s72, %s73
      %p75 = scmp.eq.s32.totalorder %s74, 0
      %s77 = sadd.s32 %s76, 1
      %s78 = scalar_select %p75, %s76, %s77
      %p81 = pneg %p75
      %p82 = scmp.eq.s32.totalorder %s13, 1
      %p83 = por %p81, %p82
      %p84 = scmp.ne.s32.totalorder %s76, %s79
      %p85 = scmp.eq.s32.totalorder %s13, 0
      %p86 = por %p84, %p85
      %p87 = scmp.ne.s32.totalorder %s76, %s79
      %p88 = scmp.eq.s32.totalorder %s18, 1
      %p89 = por %p87, %p88
      %p90 = scmp.ne.s32.totalorder %s79, %s80
      %p91 = scmp.eq.s32.totalorder %s18, 0
      %p92 = por %p90, %p91
      %p93 = scmp.ne.s32.totalorder %s79, %s80
      %p94 = scmp.eq.s32.totalorder %s19, 1
      %p95 = por %p93, %p94
      %p97 = scmp.ne.s32.totalorder %s80, %s96
      %p98 = scmp.eq.s32.totalorder %s19, 0
      %p99 = por %p97, %p98
      %p100 = scmp.le.s32.totalorder 1, %s13
      %p101 = scmp.lt.s32.totalorder %s13, 3
      %p102 = pnand %p100, %p101
      %p103 = pneg %p102
      // Predicated region
      $region9: #{tpu_custom_call.1} parent=5 // pred_check
        _
      $region10: #{tpu_custom_call.1} parent=5 // pred_check_branch
        %105 = sbr.rel (%p102) target = $region12
      $region11: #{tpu_custom_call.1} parent=5 // pred_region
        %s106 = ssub.s32 %s13, 1
      $region12: #{tpu_custom_call.1} parent=5 // pred_fallthru
        _
      %p107 = scmp.lt.s32.totalorder %s13, 2
      // Predicated region
      $region13: #{tpu_custom_call.1} parent=5 // pred_check
        %p108 = pneg %p107
      $region14: #{tpu_custom_call.1} parent=5 // pred_check_branch
        %110 = sbr.rel (%p108) target = $region16
      $region15: #{tpu_custom_call.1} parent=5 // pred_region
        // Predicated region
        $region17: #{tpu_custom_call.1} parent=15 // pred_check
          %p111 = pneg %p56
        $region18: #{tpu_custom_call.1} parent=15 // pred_check_branch
          %113 = sbr.rel (%p111) target = $region20
        $region19: #{tpu_custom_call.1} parent=15 // pred_region
          %s114 = sand.u32 %s46, 1
          %s115 = scalar_lea.sflag [#allocation3], %s114
          %s116 = sand.u32 %s46, 1
          %s117 = smul.addr %s116, 64
          %s118 = scalar_lea.vmem [#allocation2], %s117
          %s119 = smul.u32 4, %s21
          %s120 = smul.u32 2, %s22
          %122 = vsyncadd %s115, 0
          %s123 = smul.addr %s119, 2
          %s124 = sadd.s32 %s120, %s123
          %s125 = smul.addr %s20, 8
          %s126 = sadd.s32 %s124, %s125
          %s127 = smul.addr %s126, 8
          %s128 = scalar_lea.hbm %s0, %s127
          %s129 = sshll.u32 %s128, 4
          %s130 = int_to_ptr.hbm [resolvable:$true] %s129
          %s131 = sshll.u32 %s118, 4
          %s132 = int_to_ptr.vmem [resolvable:$true] %s131
          %137 = dma.hbm_to_vmem [thread:$0]  %s130, 1024, %s132, %s115, 128, 128, 8
        $region20: #{tpu_custom_call.1} parent=15 // pred_fallthru
          _
      $region16: #{tpu_custom_call.1} parent=5 // pred_fallthru
        _
      %p138 = scmp.le.s32.totalorder 1, %s13
      %p139 = scmp.lt.s32.totalorder %s13, 3
      %p140 = pnand %p138, %p139
      %p141 = pneg %p140
      // Predicated region
      $region21: #{tpu_custom_call.1} parent=5 // pred_check
        _
      $region22: #{tpu_custom_call.1} parent=5 // pred_check_branch
        %143 = sbr.rel (%p140) target = $region24
      $region23: #{tpu_custom_call.1} parent=5 // pred_region
        %s144 = ssub.s32 %s13, 1
        %s145 = sand.u32 %s49, 1
        %s146 = scalar_lea.sflag [#allocation3], %s145
        %s147 = sand.u32 %s49, 1
        %s148 = smul.addr %s147, 64
        %s149 = scalar_lea.vmem [#allocation2], %s148
        // Predicated region
        $region25: #{tpu_custom_call.1} parent=23 // pred_check
          %p150 = pneg %p62
        $region26: #{tpu_custom_call.1} parent=23 // pred_check_branch
          %152 = sbr.rel (%p150) target = $region28
        $region27: #{tpu_custom_call.1} parent=23 // pred_region
          %154 = dma.done %s146, 1024
        $region28: #{tpu_custom_call.1} parent=23 // pred_fallthru
          _
        %s155 = sand.u32 %s49, 1
        %s156 = scalar_lea.sflag [#allocation3], %s155
        %s157 = sand.u32 %s49, 1
        %s158 = smul.addr %s157, 64
        %s159 = scalar_lea.vmem [#allocation2], %s158
        %p160 = pneg %p62
        %p161 = pneg %p59
        %p162 = pneg %p92
        %p163 = pneg %p89
        %s164 = sand.u32 %s79, 1
        %s165 = scalar_lea.sflag [#allocation4], %s164
        %s166 = sand.u32 %s79, 1
        %s167 = smul.addr %s166, 16
        %s168 = scalar_lea.vmem [#allocation5], %s167
        %s169 = smul.u32 4, %s24
        %s170 = smul.u32 2, %s25
        %s171 = smul.u32 2, %s25
        %v172 = vld [vmem:[%s149] sm:$0xff]
        %v173 = vld [vmem:[%s149 + $0x8] sm:$0xff]
        %vm174 = vcmask 130048
        %175 = vst.msk [vmem:[%s168] sm:$0xff] %vm174, %v172
        %176 = vst.msk [vmem:[%s168 + $0x8] sm:$0xff] %vm174, %v173
        %s177 = scalar_lea.vmem %s149, 16 [#allocation2]
        %v178 = vld [vmem:[%s177] sm:$0xff]
        %v179 = vld [vmem:[%s177 + $0x8] sm:$0xff]
        %182 = vrot.lane.b32.xlu0 %v178, 16
        %v183 = vpop.permute.xlu0 %182
        %184 = vrot.lane.b32.xlu0 %v179, 16
        %v185 = vpop.permute.xlu0 %184
        %vm188 = vcmask 261248
        %189 = vst.msk [vmem:[%s168] sm:$0xff] %vm188, %v183
        %190 = vst.msk [vmem:[%s168 + $0x8] sm:$0xff] %vm188, %v185
        %s191 = scalar_lea.vmem %s149, 32 [#allocation2]
        %v192 = vld [vmem:[%s191] sm:$0xff]
        %v193 = vld [vmem:[%s191 + $0x8] sm:$0xff]
        %196 = vrot.lane.b32.xlu0 %v192, 32
        %v197 = vpop.permute.xlu0 %196
        %198 = vrot.lane.b32.xlu0 %v193, 32
        %v199 = vpop.permute.xlu0 %198
        %vm202 = vcmask 392448
        %203 = vst.msk [vmem:[%s168] sm:$0xff] %vm202, %v197
        %204 = vst.msk [vmem:[%s168 + $0x8] sm:$0xff] %vm202, %v199
        %s205 = scalar_lea.vmem %s149, 48 [#allocation2]
        %v206 = vld [vmem:[%s205] sm:$0xff]
        %v207 = vld [vmem:[%s205 + $0x8] sm:$0xff]
        %210 = vrot.lane.b32.xlu0 %v206, 48
        %v211 = vpop.permute.xlu0 %210
        %212 = vrot.lane.b32.xlu0 %v207, 48
        %v213 = vpop.permute.xlu0 %212
        %vm216 = vcmask 523648
        %217 = vst.msk [vmem:[%s168] sm:$0xff] %vm216, %v211
        %218 = vst.msk [vmem:[%s168 + $0x8] sm:$0xff] %vm216, %v213
        %s219 = sand.u32 %s79, 1
        %s220 = scalar_lea.sflag [#allocation4], %s219
        %s221 = sand.u32 %s79, 1
        %s222 = smul.addr %s221, 16
        %s223 = scalar_lea.vmem [#allocation5], %s222
        // Predicated region
        $region29: #{tpu_custom_call.1} parent=23 // pred_check
          %p224 = pneg %p89
        $region30: #{tpu_custom_call.1} parent=23 // pred_check_branch
          %226 = sbr.rel (%p224) target = $region32
        $region31: #{tpu_custom_call.1} parent=23 // pred_region
          %s227 = smul.u32 2, %s25
          %229 = vsyncadd %s220, 0
          %s230 = sadd.s32 %s24, %s227
          %s231 = smul.addr %s23, 2
          %s232 = sadd.s32 %s230, %s231
          %s233 = smul.addr %s232, 8
          %s234 = scalar_lea.hbm %s1, %s233
          %s235 = sshll.u32 %s223, 4
          %s236 = int_to_ptr.vmem [resolvable:$true] %s235
          %s237 = sshll.u32 %s234, 4
          %s238 = int_to_ptr.hbm [resolvable:$true] %s237
          %243 = dma.vmem_to_hbm [thread:$0]  %s236, 256, %s238, %s220, 128, 128, 8
        $region32: #{tpu_custom_call.1} parent=23 // pred_fallthru
          _
      $region24: #{tpu_custom_call.1} parent=5 // pred_fallthru
        _
      %p244 = scmp.le.s32.totalorder 2, %s13
      // Predicated region
      $region33: #{tpu_custom_call.1} parent=5 // pred_check
        %p245 = pneg %p244
      $region34: #{tpu_custom_call.1} parent=5 // pred_check_branch
        %247 = sbr.rel (%p245) target = $region36
      $region35: #{tpu_custom_call.1} parent=5 // pred_region
        %s248 = ssub.s32 %s13, 2
        // Predicated region
        $region37: #{tpu_custom_call.1} parent=35 // pred_check
          %p249 = pneg %p95
        $region38: #{tpu_custom_call.1} parent=35 // pred_check_branch
          %251 = sbr.rel (%p249) target = $region40
        $region39: #{tpu_custom_call.1} parent=35 // pred_region
          %s252 = sand.u32 %s80, 1
          %s253 = scalar_lea.sflag [#allocation4], %s252
          %s254 = sand.u32 %s80, 1
          %s255 = smul.addr %s254, 16
          %s256 = scalar_lea.vmem [#allocation5], %s255
          %258 = dma.done %s253, 256
        $region40: #{tpu_custom_call.1} parent=35 // pred_fallthru
          _
      $region36: #{tpu_custom_call.1} parent=5 // pred_fallthru
        _
    $region6: #{tpu_custom_call.1} parent=1 // loop_footer
      %s17 = sadd.s32 1, %s13
    $region7: #{tpu_custom_call.1} parent=1 // loop_footer_branch
      %12 = sbr.rel target = $region3
    $region8: #{tpu_custom_call.1} parent=1 // loop_exit
      _
    %259 = vsyncpa [#allocation3], 1
    %s260 = scalar_lea.sflag [#allocation3], 1
    %261 = vsyncpa %s260, 1
    %262 = vsyncpa [#allocation4], 1
    %s263 = scalar_lea.sflag [#allocation4], 1
    %264 = vsyncpa %s263, 1

</llo_original>
